<compile_context>
chip_gen: v7x
topology: tpu7x:2x2x1
jax: 0.10.0
libtpu: 0.0.40
codegen_flags: <defaults>
</compile_context>

<pallas_src>
import functools
import math

import jax
import jax.numpy as jnp
from jax import lax
from jax.experimental import pallas as pl
from jax.experimental.pallas import tpu as pltpu

_COS_PI_OVER_4 = math.cos(math.pi / 4.0)
_FIELDS = ("s", "cx", "cy", "cz", "d")


def _refine_loss_kernel(pred_ref, gt_ref, out_ref, *, n_pred, n_gt):
    # pred_ref: (n_pred*8, TB), gt_ref: (n_gt*8, TB); crop axis is lane-dense.
    pred = pred_ref[...]
    gt = gt_ref[...]
    tb = pred.shape[-1]

    def row(a, i, f):
        # Field f of light i, shape (1, TB) — a full lane-dense vreg row.
        return a[i * 8 + f:i * 8 + f + 1, :]

    # Precompute per-GT-light fields and inverse direction norms once.
    gt_f = []
    for j in range(n_gt):
        gx, gy, gz = row(gt, j, 0), row(gt, j, 1), row(gt, j, 2)
        gt_f.append({
            "x": gx, "y": gy, "z": gz,
            "inv": lax.rsqrt(gx * gx + gy * gy + gz * gz),
            "s": row(gt, j, 3), "cx": row(gt, j, 4),
            "cy": row(gt, j, 5), "cz": row(gt, j, 6), "d": row(gt, j, 7),
        })

    total = jnp.zeros((1, tb), jnp.float32)

    for i in range(n_pred):
        px, py, pz = row(pred, i, 0), row(pred, i, 1), row(pred, i, 2)
        # NOTE: zero-norm light directions give rsqrt(0)=inf -> NaN cosines,
        # same failure mode as the reference's divide-by-zero.
        p_inv = lax.rsqrt(px * px + py * py + pz * pz)

        best_cos = None
        best = None
        for j in range(n_gt):
            g = gt_f[j]
            cos_ij = (px * g["x"] + py * g["y"] + pz * g["z"]) * (p_inv * g["inv"])
            if best is None:
                best_cos = cos_ij
                best = {k: g[k] for k in _FIELDS}
            else:
                better = cos_ij > best_cos   # strict '>' == first index on ties
                best_cos = jnp.where(better, cos_ij, best_cos)
                best = {k: jnp.where(better, g[k], best[k]) for k in _FIELDS}

        # Skip ("continue") predictions whose closest GT angle exceeds pi/4.
        valid = (best_cos >= _COS_PI_OVER_4).astype(jnp.float32)
        d_sq = (row(pred, i, 7) - best["d"]) ** 2
        s_sq = (row(pred, i, 3) - best["s"]) ** 2
        c_sq = ((row(pred, i, 4) - best["cx"]) ** 2
                + (row(pred, i, 5) - best["cy"]) ** 2
                + (row(pred, i, 6) - best["cz"]) ** 2) * (1.0 / 3.0)
        total = total + valid * (d_sq + s_sq + c_sq)

    out_ref[...] = total


def refine_loss_batched(pred_params, gt_params, est_ambient, gt_ambient, *, tb=None):
    """Batched RefineLoss: TB crops per grid step, crop index on the lane axis.

    pred_params : (B, N_PRED, 8)
    gt_params   : (B, N_GT,   8)
    est_ambient : (B, 3)
    gt_ambient  : (B, 3)
    returns     : (B,) per-crop refine losses
    """
    B, n_pred, _ = pred_params.shape
    n_gt = gt_params.shape[1]

    pred_params = pred_params.astype(jnp.float32)
    gt_params = gt_params.astype(jnp.float32)

    if tb is None:
        # Lane-dense crop tile: multiple of 128, capped so large batches keep
        # >=2 grid steps (v7x megacore) while VMEM per block stays tiny.
        tb = max(128, min(512, ((B + 127) // 128) * 128))
    num_blocks = pl.cdiv(B, tb)
    b_pad = num_blocks * tb

    if b_pad != B:
        # Pad with 1.0 (not 0.0) so padded lanes don't hit rsqrt(0); their
        # outputs are discarded below anyway.
        pad = ((0, b_pad - B), (0, 0), (0, 0))
        pred_params = jnp.pad(pred_params, pad, constant_values=1.0)
        gt_params = jnp.pad(gt_params, pad, constant_values=1.0)

    # Crop-major layout: (num_blocks, N*8, TB); row i*8+f = field f of light i.
    pred_t = pred_params.reshape(num_blocks, tb, n_pred * 8).transpose(0, 2, 1)
    gt_t = gt_params.reshape(num_blocks, tb, n_gt * 8).transpose(0, 2, 1)

    kernel = functools.partial(_refine_loss_kernel, n_pred=n_pred, n_gt=n_gt)
    dsc = pl.pallas_call(
        kernel,
        out_shape=jax.ShapeDtypeStruct((num_blocks, 1, tb), jnp.float32),
        grid=(num_blocks,),
        in_specs=[
            pl.BlockSpec((None, n_pred * 8, tb), lambda b: (b, 0, 0)),
            pl.BlockSpec((None, n_gt * 8, tb), lambda b: (b, 0, 0)),
        ],
        out_specs=pl.BlockSpec((None, 1, tb), lambda b: (b, 0, 0)),
        compiler_params=pltpu.CompilerParams(
            dimension_semantics=("parallel",)),
    )(pred_t, gt_t)

    dsc = dsc.reshape(b_pad)[:B]

    # a_loss = F.mse_loss(gt_ambient, estimated_ambient): 3 FLOPs per crop,
    # computed in plain XLA so the kernel only moves light-param slabs.
    a_loss = jnp.mean((gt_ambient.astype(jnp.float32)
                       - est_ambient.astype(jnp.float32)) ** 2, axis=-1)
    return dsc + a_loss


def refine_loss(pred_params, gt_params, est_ambient, gt_ambient):
    """Single-crop RefineLoss.forward (scalar), matching the PyTorch module."""
    return refine_loss_batched(pred_params[None], gt_params[None],
                               est_ambient.reshape(1, 3),
                               gt_ambient.reshape(1, 3))[0]


if __name__ == "__main__":
    key = jax.random.PRNGKey(0)
    k_pred, k_gt, k_ea, k_ga = jax.random.split(key, 4)

    B, N_PRED, N_GT = 2, 4, 6

    # Deterministic synthetic light params: [lx, ly, lz, s, cx, cy, cz, d]
    pred_params = jax.random.normal(k_pred, (B, N_PRED, 8), dtype=jnp.float32)
    gt_params = jax.random.normal(k_gt, (B, N_GT, 8), dtype=jnp.float32)
    # Make a couple of predicted directions close to GT ones so the pi/4 gate
    # passes for some lights (exercises both branches of the `continue`).
    pred_params = pred_params.at[0, 0, 0:3].set(gt_params[0, 1, 0:3] + 0.05)
    pred_params = pred_params.at[1, 2, 0:3].set(gt_params[1, 4, 0:3] - 0.05)

    est_ambient = jax.random.uniform(k_ea, (B, 3), dtype=jnp.float32)
    gt_ambient = jax.random.uniform(k_ga, (B, 3), dtype=jnp.float32)

    losses = refine_loss_batched(pred_params, gt_params, est_ambient, gt_ambient)
    jax.block_until_ready(losses)

    # Pure-JAX reference with the original loop semantics (sanity check).
    def ref_single(pred, gt, est_amb, gt_amb):
        a_loss = jnp.mean((gt_amb - est_amb) ** 2)
        pn = pred[:, 0:3] / jnp.linalg.norm(pred[:, 0:3], axis=-1, keepdims=True)
        gn = gt[:, 0:3] / jnp.linalg.norm(gt[:, 0:3], axis=-1, keepdims=True)
        delta = jnp.arccos(jnp.clip(pn @ gn.T, -1.0, 1.0))
        idx = jnp.argmin(delta, axis=-1)
        closest = gt[idx]
        valid = delta[jnp.arange(pred.shape[0]), idx] <= jnp.pi / 4.0
        d_l = (pred[:, 7] - closest[:, 7]) ** 2
        s_l = (pred[:, 3] - closest[:, 3]) ** 2
        c_l = jnp.mean((pred[:, 4:7] - closest[:, 4:7]) ** 2, axis=-1)
        return a_loss + jnp.sum(jnp.where(valid, d_l + s_l + c_l, 0.0))

    ref = jnp.stack([ref_single(pred_params[b], gt_params[b],
                                est_ambient[b], gt_ambient[b])
                     for b in range(B)])
    assert jnp.allclose(losses, ref, atol=1e-5, rtol=1e-5), (losses, ref)

    # Single-crop path (matches the module's per-crop forward signature).
    single = refine_loss(pred_params[0], gt_params[0],
                         est_ambient[0], gt_ambient[0])
    jax.block_until_ready(single)
    assert jnp.allclose(single, ref[0], atol=1e-5, rtol=1e-5), (single, ref[0])

    print("KERNEL_OK")
</pallas_src>

<mosaic_0001>
module attributes {stable_mosaic.version = 11 : i64} {
  func.func @_refine_loss_kernel(%arg0: i32, %arg1: memref<1x32x128xf32, #tpu.memory_space<vmem>>, %arg2: memref<1x48x128xf32, #tpu.memory_space<vmem>>, %arg3: memref<1x1x128xf32, #tpu.memory_space<vmem>>) attributes {dimension_semantics = [#tpu.dimension_semantics<parallel>], iteration_bounds = array<i64: 1>, scalar_prefetch = 0 : i64, scratch_operands = 0 : i64, tpu.core_type = #tpu.core_type<tc>, window_params = [{transform_indices = @transform_0, window_bounds = array<i64: 1, 32, 128>}, {transform_indices = @transform_1, window_bounds = array<i64: 1, 48, 128>}, {transform_indices = @transform_2, window_bounds = array<i64: 1, 1, 128>}]} {
    %c0 = arith.constant 0 : index
    %c0_0 = arith.constant 0 : index
    %c0_1 = arith.constant 0 : index
    %0 = vector.load %arg1[%c0, %c0_0, %c0_1] : memref<1x32x128xf32, #tpu.memory_space<vmem>>, vector<1x32x128xf32>
    %1 = vector.shape_cast %0 : vector<1x32x128xf32> to vector<32x128xf32>
    %c0_2 = arith.constant 0 : index
    %c0_3 = arith.constant 0 : index
    %c0_4 = arith.constant 0 : index
    %2 = vector.load %arg2[%c0_2, %c0_3, %c0_4] : memref<1x48x128xf32, #tpu.memory_space<vmem>>, vector<1x48x128xf32>
    %3 = vector.shape_cast %2 : vector<1x48x128xf32> to vector<48x128xf32>
    %4 = vector.extract_strided_slice %3 {offsets = [0, 0], sizes = [1, 128], strides = [1, 1]} : vector<48x128xf32> to vector<1x128xf32>
    %5 = vector.extract_strided_slice %3 {offsets = [1, 0], sizes = [1, 128], strides = [1, 1]} : vector<48x128xf32> to vector<1x128xf32>
    %6 = vector.extract_strided_slice %3 {offsets = [2, 0], sizes = [1, 128], strides = [1, 1]} : vector<48x128xf32> to vector<1x128xf32>
    %7 = arith.mulf %4, %4 : vector<1x128xf32>
    %8 = arith.mulf %5, %5 : vector<1x128xf32>
    %9 = arith.addf %7, %8 : vector<1x128xf32>
    %10 = arith.mulf %6, %6 : vector<1x128xf32>
    %11 = arith.addf %9, %10 : vector<1x128xf32>
    %12 = math.rsqrt %11 : vector<1x128xf32>
    %13 = vector.extract_strided_slice %3 {offsets = [3, 0], sizes = [1, 128], strides = [1, 1]} : vector<48x128xf32> to vector<1x128xf32>
    %14 = vector.extract_strided_slice %3 {offsets = [4, 0], sizes = [1, 128], strides = [1, 1]} : vector<48x128xf32> to vector<1x128xf32>
    %15 = vector.extract_strided_slice %3 {offsets = [5, 0], sizes = [1, 128], strides = [1, 1]} : vector<48x128xf32> to vector<1x128xf32>
    %16 = vector.extract_strided_slice %3 {offsets = [6, 0], sizes = [1, 128], strides = [1, 1]} : vector<48x128xf32> to vector<1x128xf32>
    %17 = vector.extract_strided_slice %3 {offsets = [7, 0], sizes = [1, 128], strides = [1, 1]} : vector<48x128xf32> to vector<1x128xf32>
    %18 = vector.extract_strided_slice %3 {offsets = [8, 0], sizes = [1, 128], strides = [1, 1]} : vector<48x128xf32> to vector<1x128xf32>
    %19 = vector.extract_strided_slice %3 {offsets = [9, 0], sizes = [1, 128], strides = [1, 1]} : vector<48x128xf32> to vector<1x128xf32>
    %20 = vector.extract_strided_slice %3 {offsets = [10, 0], sizes = [1, 128], strides = [1, 1]} : vector<48x128xf32> to vector<1x128xf32>
    %21 = arith.mulf %18, %18 : vector<1x128xf32>
    %22 = arith.mulf %19, %19 : vector<1x128xf32>
    %23 = arith.addf %21, %22 : vector<1x128xf32>
    %24 = arith.mulf %20, %20 : vector<1x128xf32>
    %25 = arith.addf %23, %24 : vector<1x128xf32>
    %26 = math.rsqrt %25 : vector<1x128xf32>
    %27 = vector.extract_strided_slice %3 {offsets = [11, 0], sizes = [1, 128], strides = [1, 1]} : vector<48x128xf32> to vector<1x128xf32>
    %28 = vector.extract_strided_slice %3 {offsets = [12, 0], sizes = [1, 128], strides = [1, 1]} : vector<48x128xf32> to vector<1x128xf32>
    %29 = vector.extract_strided_slice %3 {offsets = [13, 0], sizes = [1, 128], strides = [1, 1]} : vector<48x128xf32> to vector<1x128xf32>
    %30 = vector.extract_strided_slice %3 {offsets = [14, 0], sizes = [1, 128], strides = [1, 1]} : vector<48x128xf32> to vector<1x128xf32>
    %31 = vector.extract_strided_slice %3 {offsets = [15, 0], sizes = [1, 128], strides = [1, 1]} : vector<48x128xf32> to vector<1x128xf32>
    %32 = vector.extract_strided_slice %3 {offsets = [16, 0], sizes = [1, 128], strides = [1, 1]} : vector<48x128xf32> to vector<1x128xf32>
    %33 = vector.extract_strided_slice %3 {offsets = [17, 0], sizes = [1, 128], strides = [1, 1]} : vector<48x128xf32> to vector<1x128xf32>
    %34 = vector.extract_strided_slice %3 {offsets = [18, 0], sizes = [1, 128], strides = [1, 1]} : vector<48x128xf32> to vector<1x128xf32>
    %35 = arith.mulf %32, %32 : vector<1x128xf32>
    %36 = arith.mulf %33, %33 : vector<1x128xf32>
    %37 = arith.addf %35, %36 : vector<1x128xf32>
    %38 = arith.mulf %34, %34 : vector<1x128xf32>
    %39 = arith.addf %37, %38 : vector<1x128xf32>
    %40 = math.rsqrt %39 : vector<1x128xf32>
    %41 = vector.extract_strided_slice %3 {offsets = [19, 0], sizes = [1, 128], strides = [1, 1]} : vector<48x128xf32> to vector<1x128xf32>
    %42 = vector.extract_strided_slice %3 {offsets = [20, 0], sizes = [1, 128], strides = [1, 1]} : vector<48x128xf32> to vector<1x128xf32>
    %43 = vector.extract_strided_slice %3 {offsets = [21, 0], sizes = [1, 128], strides = [1, 1]} : vector<48x128xf32> to vector<1x128xf32>
    %44 = vector.extract_strided_slice %3 {offsets = [22, 0], sizes = [1, 128], strides = [1, 1]} : vector<48x128xf32> to vector<1x128xf32>
    %45 = vector.extract_strided_slice %3 {offsets = [23, 0], sizes = [1, 128], strides = [1, 1]} : vector<48x128xf32> to vector<1x128xf32>
    %46 = vector.extract_strided_slice %3 {offsets = [24, 0], sizes = [1, 128], strides = [1, 1]} : vector<48x128xf32> to vector<1x128xf32>
    %47 = vector.extract_strided_slice %3 {offsets = [25, 0], sizes = [1, 128], strides = [1, 1]} : vector<48x128xf32> to vector<1x128xf32>
    %48 = vector.extract_strided_slice %3 {offsets = [26, 0], sizes = [1, 128], strides = [1, 1]} : vector<48x128xf32> to vector<1x128xf32>
    %49 = arith.mulf %46, %46 : vector<1x128xf32>
    %50 = arith.mulf %47, %47 : vector<1x128xf32>
    %51 = arith.addf %49, %50 : vector<1x128xf32>
    %52 = arith.mulf %48, %48 : vector<1x128xf32>
    %53 = arith.addf %51, %52 : vector<1x128xf32>
    %54 = math.rsqrt %53 : vector<1x128xf32>
    %55 = vector.extract_strided_slice %3 {offsets = [27, 0], sizes = [1, 128], strides = [1, 1]} : vector<48x128xf32> to vector<1x128xf32>
    %56 = vector.extract_strided_slice %3 {offsets = [28, 0], sizes = [1, 128], strides = [1, 1]} : vector<48x128xf32> to vector<1x128xf32>
    %57 = vector.extract_strided_slice %3 {offsets = [29, 0], sizes = [1, 128], strides = [1, 1]} : vector<48x128xf32> to vector<1x128xf32>
    %58 = vector.extract_strided_slice %3 {offsets = [30, 0], sizes = [1, 128], strides = [1, 1]} : vector<48x128xf32> to vector<1x128xf32>
    %59 = vector.extract_strided_slice %3 {offsets = [31, 0], sizes = [1, 128], strides = [1, 1]} : vector<48x128xf32> to vector<1x128xf32>
    %60 = vector.extract_strided_slice %3 {offsets = [32, 0], sizes = [1, 128], strides = [1, 1]} : vector<48x128xf32> to vector<1x128xf32>
    %61 = vector.extract_strided_slice %3 {offsets = [33, 0], sizes = [1, 128], strides = [1, 1]} : vector<48x128xf32> to vector<1x128xf32>
    %62 = vector.extract_strided_slice %3 {offsets = [34, 0], sizes = [1, 128], strides = [1, 1]} : vector<48x128xf32> to vector<1x128xf32>
    %63 = arith.mulf %60, %60 : vector<1x128xf32>
    %64 = arith.mulf %61, %61 : vector<1x128xf32>
    %65 = arith.addf %63, %64 : vector<1x128xf32>
    %66 = arith.mulf %62, %62 : vector<1x128xf32>
    %67 = arith.addf %65, %66 : vector<1x128xf32>
    %68 = math.rsqrt %67 : vector<1x128xf32>
    %69 = vector.extract_strided_slice %3 {offsets = [35, 0], sizes = [1, 128], strides = [1, 1]} : vector<48x128xf32> to vector<1x128xf32>
    %70 = vector.extract_strided_slice %3 {offsets = [36, 0], sizes = [1, 128], strides = [1, 1]} : vector<48x128xf32> to vector<1x128xf32>
    %71 = vector.extract_strided_slice %3 {offsets = [37, 0], sizes = [1, 128], strides = [1, 1]} : vector<48x128xf32> to vector<1x128xf32>
    %72 = vector.extract_strided_slice %3 {offsets = [38, 0], sizes = [1, 128], strides = [1, 1]} : vector<48x128xf32> to vector<1x128xf32>
    %73 = vector.extract_strided_slice %3 {offsets = [39, 0], sizes = [1, 128], strides = [1, 1]} : vector<48x128xf32> to vector<1x128xf32>
    %74 = vector.extract_strided_slice %3 {offsets = [40, 0], sizes = [1, 128], strides = [1, 1]} : vector<48x128xf32> to vector<1x128xf32>
    %75 = vector.extract_strided_slice %3 {offsets = [41, 0], sizes = [1, 128], strides = [1, 1]} : vector<48x128xf32> to vector<1x128xf32>
    %76 = vector.extract_strided_slice %3 {offsets = [42, 0], sizes = [1, 128], strides = [1, 1]} : vector<48x128xf32> to vector<1x128xf32>
    %77 = arith.mulf %74, %74 : vector<1x128xf32>
    %78 = arith.mulf %75, %75 : vector<1x128xf32>
    %79 = arith.addf %77, %78 : vector<1x128xf32>
    %80 = arith.mulf %76, %76 : vector<1x128xf32>
    %81 = arith.addf %79, %80 : vector<1x128xf32>
    %82 = math.rsqrt %81 : vector<1x128xf32>
    %83 = vector.extract_strided_slice %3 {offsets = [43, 0], sizes = [1, 128], strides = [1, 1]} : vector<48x128xf32> to vector<1x128xf32>
    %84 = vector.extract_strided_slice %3 {offsets = [44, 0], sizes = [1, 128], strides = [1, 1]} : vector<48x128xf32> to vector<1x128xf32>
    %85 = vector.extract_strided_slice %3 {offsets = [45, 0], sizes = [1, 128], strides = [1, 1]} : vector<48x128xf32> to vector<1x128xf32>
    %86 = vector.extract_strided_slice %3 {offsets = [46, 0], sizes = [1, 128], strides = [1, 1]} : vector<48x128xf32> to vector<1x128xf32>
    %87 = vector.extract_strided_slice %3 {offsets = [47, 0], sizes = [1, 128], strides = [1, 1]} : vector<48x128xf32> to vector<1x128xf32>
    %cst = arith.constant 0.000000e+00 : f32
    %88 = vector.broadcast %cst : f32 to vector<1x128xf32>
    %89 = vector.extract_strided_slice %1 {offsets = [0, 0], sizes = [1, 128], strides = [1, 1]} : vector<32x128xf32> to vector<1x128xf32>
    %90 = vector.extract_strided_slice %1 {offsets = [1, 0], sizes = [1, 128], strides = [1, 1]} : vector<32x128xf32> to vector<1x128xf32>
    %91 = vector.extract_strided_slice %1 {offsets = [2, 0], sizes = [1, 128], strides = [1, 1]} : vector<32x128xf32> to vector<1x128xf32>
    %92 = arith.mulf %89, %89 : vector<1x128xf32>
    %93 = arith.mulf %90, %90 : vector<1x128xf32>
    %94 = arith.addf %92, %93 : vector<1x128xf32>
    %95 = arith.mulf %91, %91 : vector<1x128xf32>
    %96 = arith.addf %94, %95 : vector<1x128xf32>
    %97 = math.rsqrt %96 : vector<1x128xf32>
    %98 = arith.mulf %89, %4 : vector<1x128xf32>
    %99 = arith.mulf %90, %5 : vector<1x128xf32>
    %100 = arith.addf %98, %99 : vector<1x128xf32>
    %101 = arith.mulf %91, %6 : vector<1x128xf32>
    %102 = arith.addf %100, %101 : vector<1x128xf32>
    %103 = arith.mulf %97, %12 : vector<1x128xf32>
    %104 = arith.mulf %102, %103 : vector<1x128xf32>
    %105 = arith.mulf %89, %18 : vector<1x128xf32>
    %106 = arith.mulf %90, %19 : vector<1x128xf32>
    %107 = arith.addf %105, %106 : vector<1x128xf32>
    %108 = arith.mulf %91, %20 : vector<1x128xf32>
    %109 = arith.addf %107, %108 : vector<1x128xf32>
    %110 = arith.mulf %97, %26 : vector<1x128xf32>
    %111 = arith.mulf %109, %110 : vector<1x128xf32>
    %112 = arith.cmpf ogt, %111, %104 : vector<1x128xf32>
    %113 = arith.select %112, %111, %104 : vector<1x128xi1>, vector<1x128xf32>
    %114 = arith.select %112, %27, %13 : vector<1x128xi1>, vector<1x128xf32>
    %115 = arith.select %112, %28, %14 : vector<1x128xi1>, vector<1x128xf32>
    %116 = arith.select %112, %29, %15 : vector<1x128xi1>, vector<1x128xf32>
    %117 = arith.select %112, %30, %16 : vector<1x128xi1>, vector<1x128xf32>
    %118 = arith.select %112, %31, %17 : vector<1x128xi1>, vector<1x128xf32>
    %119 = arith.mulf %89, %32 : vector<1x128xf32>
    %120 = arith.mulf %90, %33 : vector<1x128xf32>
    %121 = arith.addf %119, %120 : vector<1x128xf32>
    %122 = arith.mulf %91, %34 : vector<1x128xf32>
    %123 = arith.addf %121, %122 : vector<1x128xf32>
    %124 = arith.mulf %97, %40 : vector<1x128xf32>
    %125 = arith.mulf %123, %124 : vector<1x128xf32>
    %126 = arith.cmpf ogt, %125, %113 : vector<1x128xf32>
    %127 = arith.select %126, %125, %113 : vector<1x128xi1>, vector<1x128xf32>
    %128 = arith.select %126, %41, %114 : vector<1x128xi1>, vector<1x128xf32>
    %129 = arith.select %126, %42, %115 : vector<1x128xi1>, vector<1x128xf32>
    %130 = arith.select %126, %43, %116 : vector<1x128xi1>, vector<1x128xf32>
    %131 = arith.select %126, %44, %117 : vector<1x128xi1>, vector<1x128xf32>
    %132 = arith.select %126, %45, %118 : vector<1x128xi1>, vector<1x128xf32>
    %133 = arith.mulf %89, %46 : vector<1x128xf32>
    %134 = arith.mulf %90, %47 : vector<1x128xf32>
    %135 = arith.addf %133, %134 : vector<1x128xf32>
    %136 = arith.mulf %91, %48 : vector<1x128xf32>
    %137 = arith.addf %135, %136 : vector<1x128xf32>
    %138 = arith.mulf %97, %54 : vector<1x128xf32>
    %139 = arith.mulf %137, %138 : vector<1x128xf32>
    %140 = arith.cmpf ogt, %139, %127 : vector<1x128xf32>
    %141 = arith.select %140, %139, %127 : vector<1x128xi1>, vector<1x128xf32>
    %142 = arith.select %140, %55, %128 : vector<1x128xi1>, vector<1x128xf32>
    %143 = arith.select %140, %56, %129 : vector<1x128xi1>, vector<1x128xf32>
    %144 = arith.select %140, %57, %130 : vector<1x128xi1>, vector<1x128xf32>
    %145 = arith.select %140, %58, %131 : vector<1x128xi1>, vector<1x128xf32>
    %146 = arith.select %140, %59, %132 : vector<1x128xi1>, vector<1x128xf32>
    %147 = arith.mulf %89, %60 : vector<1x128xf32>
    %148 = arith.mulf %90, %61 : vector<1x128xf32>
    %149 = arith.addf %147, %148 : vector<1x128xf32>
    %150 = arith.mulf %91, %62 : vector<1x128xf32>
    %151 = arith.addf %149, %150 : vector<1x128xf32>
    %152 = arith.mulf %97, %68 : vector<1x128xf32>
    %153 = arith.mulf %151, %152 : vector<1x128xf32>
    %154 = arith.cmpf ogt, %153, %141 : vector<1x128xf32>
    %155 = arith.select %154, %153, %141 : vector<1x128xi1>, vector<1x128xf32>
    %156 = arith.select %154, %69, %142 : vector<1x128xi1>, vector<1x128xf32>
    %157 = arith.select %154, %70, %143 : vector<1x128xi1>, vector<1x128xf32>
    %158 = arith.select %154, %71, %144 : vector<1x128xi1>, vector<1x128xf32>
    %159 = arith.select %154, %72, %145 : vector<1x128xi1>, vector<1x128xf32>
    %160 = arith.select %154, %73, %146 : vector<1x128xi1>, vector<1x128xf32>
    %161 = arith.mulf %89, %74 : vector<1x128xf32>
    %162 = arith.mulf %90, %75 : vector<1x128xf32>
    %163 = arith.addf %161, %162 : vector<1x128xf32>
    %164 = arith.mulf %91, %76 : vector<1x128xf32>
    %165 = arith.addf %163, %164 : vector<1x128xf32>
    %166 = arith.mulf %97, %82 : vector<1x128xf32>
    %167 = arith.mulf %165, %166 : vector<1x128xf32>
    %168 = arith.cmpf ogt, %167, %155 : vector<1x128xf32>
    %169 = arith.select %168, %167, %155 : vector<1x128xi1>, vector<1x128xf32>
    %170 = arith.select %168, %83, %156 : vector<1x128xi1>, vector<1x128xf32>
    %171 = arith.select %168, %84, %157 : vector<1x128xi1>, vector<1x128xf32>
    %172 = arith.select %168, %85, %158 : vector<1x128xi1>, vector<1x128xf32>
    %173 = arith.select %168, %86, %159 : vector<1x128xi1>, vector<1x128xf32>
    %174 = arith.select %168, %87, %160 : vector<1x128xi1>, vector<1x128xf32>
    %cst_5 = arith.constant 0.707106769 : f32
    %175 = vector.broadcast %cst_5 : f32 to vector<1x128xf32>
    %176 = arith.cmpf oge, %169, %175 : vector<1x128xf32>
    %177 = arith.extui %176 : vector<1x128xi1> to vector<1x128xi32>
    %178 = arith.sitofp %177 : vector<1x128xi32> to vector<1x128xf32>
    %179 = vector.extract_strided_slice %1 {offsets = [7, 0], sizes = [1, 128], strides = [1, 1]} : vector<32x128xf32> to vector<1x128xf32>
    %180 = arith.subf %179, %174 : vector<1x128xf32>
    %181 = arith.mulf %180, %180 : vector<1x128xf32>
    %182 = vector.extract_strided_slice %1 {offsets = [3, 0], sizes = [1, 128], strides = [1, 1]} : vector<32x128xf32> to vector<1x128xf32>
    %183 = arith.subf %182, %170 : vector<1x128xf32>
    %184 = arith.mulf %183, %183 : vector<1x128xf32>
    %185 = vector.extract_strided_slice %1 {offsets = [4, 0], sizes = [1, 128], strides = [1, 1]} : vector<32x128xf32> to vector<1x128xf32>
    %186 = arith.subf %185, %171 : vector<1x128xf32>
    %187 = arith.mulf %186, %186 : vector<1x128xf32>
    %188 = vector.extract_strided_slice %1 {offsets = [5, 0], sizes = [1, 128], strides = [1, 1]} : vector<32x128xf32> to vector<1x128xf32>
    %189 = arith.subf %188, %172 : vector<1x128xf32>
    %190 = arith.mulf %189, %189 : vector<1x128xf32>
    %191 = arith.addf %187, %190 : vector<1x128xf32>
    %192 = vector.extract_strided_slice %1 {offsets = [6, 0], sizes = [1, 128], strides = [1, 1]} : vector<32x128xf32> to vector<1x128xf32>
    %193 = arith.subf %192, %173 : vector<1x128xf32>
    %194 = arith.mulf %193, %193 : vector<1x128xf32>
    %195 = arith.addf %191, %194 : vector<1x128xf32>
    %cst_6 = arith.constant 0.333333343 : f32
    %196 = vector.broadcast %cst_6 : f32 to vector<1x128xf32>
    %197 = arith.mulf %195, %196 : vector<1x128xf32>
    %198 = arith.addf %181, %184 : vector<1x128xf32>
    %199 = arith.addf %198, %197 : vector<1x128xf32>
    %200 = arith.mulf %178, %199 : vector<1x128xf32>
    %201 = arith.addf %88, %200 : vector<1x128xf32>
    %202 = vector.extract_strided_slice %1 {offsets = [8, 0], sizes = [1, 128], strides = [1, 1]} : vector<32x128xf32> to vector<1x128xf32>
    %203 = vector.extract_strided_slice %1 {offsets = [9, 0], sizes = [1, 128], strides = [1, 1]} : vector<32x128xf32> to vector<1x128xf32>
    %204 = vector.extract_strided_slice %1 {offsets = [10, 0], sizes = [1, 128], strides = [1, 1]} : vector<32x128xf32> to vector<1x128xf32>
    %205 = arith.mulf %202, %202 : vector<1x128xf32>
    %206 = arith.mulf %203, %203 : vector<1x128xf32>
    %207 = arith.addf %205, %206 : vector<1x128xf32>
    %208 = arith.mulf %204, %204 : vector<1x128xf32>
    %209 = arith.addf %207, %208 : vector<1x128xf32>
    %210 = math.rsqrt %209 : vector<1x128xf32>
    %211 = arith.mulf %202, %4 : vector<1x128xf32>
    %212 = arith.mulf %203, %5 : vector<1x128xf32>
    %213 = arith.addf %211, %212 : vector<1x128xf32>
    %214 = arith.mulf %204, %6 : vector<1x128xf32>
    %215 = arith.addf %213, %214 : vector<1x128xf32>
    %216 = arith.mulf %210, %12 : vector<1x128xf32>
    %217 = arith.mulf %215, %216 : vector<1x128xf32>
    %218 = arith.mulf %202, %18 : vector<1x128xf32>
    %219 = arith.mulf %203, %19 : vector<1x128xf32>
    %220 = arith.addf %218, %219 : vector<1x128xf32>
    %221 = arith.mulf %204, %20 : vector<1x128xf32>
    %222 = arith.addf %220, %221 : vector<1x128xf32>
    %223 = arith.mulf %210, %26 : vector<1x128xf32>
    %224 = arith.mulf %222, %223 : vector<1x128xf32>
    %225 = arith.cmpf ogt, %224, %217 : vector<1x128xf32>
    %226 = arith.select %225, %224, %217 : vector<1x128xi1>, vector<1x128xf32>
    %227 = arith.select %225, %27, %13 : vector<1x128xi1>, vector<1x128xf32>
    %228 = arith.select %225, %28, %14 : vector<1x128xi1>, vector<1x128xf32>
    %229 = arith.select %225, %29, %15 : vector<1x128xi1>, vector<1x128xf32>
    %230 = arith.select %225, %30, %16 : vector<1x128xi1>, vector<1x128xf32>
    %231 = arith.select %225, %31, %17 : vector<1x128xi1>, vector<1x128xf32>
    %232 = arith.mulf %202, %32 : vector<1x128xf32>
    %233 = arith.mulf %203, %33 : vector<1x128xf32>
    %234 = arith.addf %232, %233 : vector<1x128xf32>
    %235 = arith.mulf %204, %34 : vector<1x128xf32>
    %236 = arith.addf %234, %235 : vector<1x128xf32>
    %237 = arith.mulf %210, %40 : vector<1x128xf32>
    %238 = arith.mulf %236, %237 : vector<1x128xf32>
    %239 = arith.cmpf ogt, %238, %226 : vector<1x128xf32>
    %240 = arith.select %239, %238, %226 : vector<1x128xi1>, vector<1x128xf32>
    %241 = arith.select %239, %41, %227 : vector<1x128xi1>, vector<1x128xf32>
    %242 = arith.select %239, %42, %228 : vector<1x128xi1>, vector<1x128xf32>
    %243 = arith.select %239, %43, %229 : vector<1x128xi1>, vector<1x128xf32>
    %244 = arith.select %239, %44, %230 : vector<1x128xi1>, vector<1x128xf32>
    %245 = arith.select %239, %45, %231 : vector<1x128xi1>, vector<1x128xf32>
    %246 = arith.mulf %202, %46 : vector<1x128xf32>
    %247 = arith.mulf %203, %47 : vector<1x128xf32>
    %248 = arith.addf %246, %247 : vector<1x128xf32>
    %249 = arith.mulf %204, %48 : vector<1x128xf32>
    %250 = arith.addf %248, %249 : vector<1x128xf32>
    %251 = arith.mulf %210, %54 : vector<1x128xf32>
    %252 = arith.mulf %250, %251 : vector<1x128xf32>
    %253 = arith.cmpf ogt, %252, %240 : vector<1x128xf32>
    %254 = arith.select %253, %252, %240 : vector<1x128xi1>, vector<1x128xf32>
    %255 = arith.select %253, %55, %241 : vector<1x128xi1>, vector<1x128xf32>
    %256 = arith.select %253, %56, %242 : vector<1x128xi1>, vector<1x128xf32>
    %257 = arith.select %253, %57, %243 : vector<1x128xi1>, vector<1x128xf32>
    %258 = arith.select %253, %58, %244 : vector<1x128xi1>, vector<1x128xf32>
    %259 = arith.select %253, %59, %245 : vector<1x128xi1>, vector<1x128xf32>
    %260 = arith.mulf %202, %60 : vector<1x128xf32>
    %261 = arith.mulf %203, %61 : vector<1x128xf32>
    %262 = arith.addf %260, %261 : vector<1x128xf32>
    %263 = arith.mulf %204, %62 : vector<1x128xf32>
    %264 = arith.addf %262, %263 : vector<1x128xf32>
    %265 = arith.mulf %210, %68 : vector<1x128xf32>
    %266 = arith.mulf %264, %265 : vector<1x128xf32>
    %267 = arith.cmpf ogt, %266, %254 : vector<1x128xf32>
    %268 = arith.select %267, %266, %254 : vector<1x128xi1>, vector<1x128xf32>
    %269 = arith.select %267, %69, %255 : vector<1x128xi1>, vector<1x128xf32>
    %270 = arith.select %267, %70, %256 : vector<1x128xi1>, vector<1x128xf32>
    %271 = arith.select %267, %71, %257 : vector<1x128xi1>, vector<1x128xf32>
    %272 = arith.select %267, %72, %258 : vector<1x128xi1>, vector<1x128xf32>
    %273 = arith.select %267, %73, %259 : vector<1x128xi1>, vector<1x128xf32>
    %274 = arith.mulf %202, %74 : vector<1x128xf32>
    %275 = arith.mulf %203, %75 : vector<1x128xf32>
    %276 = arith.addf %274, %275 : vector<1x128xf32>
    %277 = arith.mulf %204, %76 : vector<1x128xf32>
    %278 = arith.addf %276, %277 : vector<1x128xf32>
    %279 = arith.mulf %210, %82 : vector<1x128xf32>
    %280 = arith.mulf %278, %279 : vector<1x128xf32>
    %281 = arith.cmpf ogt, %280, %268 : vector<1x128xf32>
    %282 = arith.select %281, %280, %268 : vector<1x128xi1>, vector<1x128xf32>
    %283 = arith.select %281, %83, %269 : vector<1x128xi1>, vector<1x128xf32>
    %284 = arith.select %281, %84, %270 : vector<1x128xi1>, vector<1x128xf32>
    %285 = arith.select %281, %85, %271 : vector<1x128xi1>, vector<1x128xf32>
    %286 = arith.select %281, %86, %272 : vector<1x128xi1>, vector<1x128xf32>
    %287 = arith.select %281, %87, %273 : vector<1x128xi1>, vector<1x128xf32>
    %cst_7 = arith.constant 0.707106769 : f32
    %288 = vector.broadcast %cst_7 : f32 to vector<1x128xf32>
    %289 = arith.cmpf oge, %282, %288 : vector<1x128xf32>
    %290 = arith.extui %289 : vector<1x128xi1> to vector<1x128xi32>
    %291 = arith.sitofp %290 : vector<1x128xi32> to vector<1x128xf32>
    %292 = vector.extract_strided_slice %1 {offsets = [15, 0], sizes = [1, 128], strides = [1, 1]} : vector<32x128xf32> to vector<1x128xf32>
    %293 = arith.subf %292, %287 : vector<1x128xf32>
    %294 = arith.mulf %293, %293 : vector<1x128xf32>
    %295 = vector.extract_strided_slice %1 {offsets = [11, 0], sizes = [1, 128], strides = [1, 1]} : vector<32x128xf32> to vector<1x128xf32>
    %296 = arith.subf %295, %283 : vector<1x128xf32>
    %297 = arith.mulf %296, %296 : vector<1x128xf32>
    %298 = vector.extract_strided_slice %1 {offsets = [12, 0], sizes = [1, 128], strides = [1, 1]} : vector<32x128xf32> to vector<1x128xf32>
    %299 = arith.subf %298, %284 : vector<1x128xf32>
    %300 = arith.mulf %299, %299 : vector<1x128xf32>
    %301 = vector.extract_strided_slice %1 {offsets = [13, 0], sizes = [1, 128], strides = [1, 1]} : vector<32x128xf32> to vector<1x128xf32>
    %302 = arith.subf %301, %285 : vector<1x128xf32>
    %303 = arith.mulf %302, %302 : vector<1x128xf32>
    %304 = arith.addf %300, %303 : vector<1x128xf32>
    %305 = vector.extract_strided_slice %1 {offsets = [14, 0], sizes = [1, 128], strides = [1, 1]} : vector<32x128xf32> to vector<1x128xf32>
    %306 = arith.subf %305, %286 : vector<1x128xf32>
    %307 = arith.mulf %306, %306 : vector<1x128xf32>
    %308 = arith.addf %304, %307 : vector<1x128xf32>
    %cst_8 = arith.constant 0.333333343 : f32
    %309 = vector.broadcast %cst_8 : f32 to vector<1x128xf32>
    %310 = arith.mulf %308, %309 : vector<1x128xf32>
    %311 = arith.addf %294, %297 : vector<1x128xf32>
    %312 = arith.addf %311, %310 : vector<1x128xf32>
    %313 = arith.mulf %291, %312 : vector<1x128xf32>
    %314 = arith.addf %201, %313 : vector<1x128xf32>
    %315 = vector.extract_strided_slice %1 {offsets = [16, 0], sizes = [1, 128], strides = [1, 1]} : vector<32x128xf32> to vector<1x128xf32>
    %316 = vector.extract_strided_slice %1 {offsets = [17, 0], sizes = [1, 128], strides = [1, 1]} : vector<32x128xf32> to vector<1x128xf32>
    %317 = vector.extract_strided_slice %1 {offsets = [18, 0], sizes = [1, 128], strides = [1, 1]} : vector<32x128xf32> to vector<1x128xf32>
    %318 = arith.mulf %315, %315 : vector<1x128xf32>
    %319 = arith.mulf %316, %316 : vector<1x128xf32>
    %320 = arith.addf %318, %319 : vector<1x128xf32>
    %321 = arith.mulf %317, %317 : vector<1x128xf32>
    %322 = arith.addf %320, %321 : vector<1x128xf32>
    %323 = math.rsqrt %322 : vector<1x128xf32>
    %324 = arith.mulf %315, %4 : vector<1x128xf32>
    %325 = arith.mulf %316, %5 : vector<1x128xf32>
    %326 = arith.addf %324, %325 : vector<1x128xf32>
    %327 = arith.mulf %317, %6 : vector<1x128xf32>
    %328 = arith.addf %326, %327 : vector<1x128xf32>
    %329 = arith.mulf %323, %12 : vector<1x128xf32>
    %330 = arith.mulf %328, %329 : vector<1x128xf32>
    %331 = arith.mulf %315, %18 : vector<1x128xf32>
    %332 = arith.mulf %316, %19 : vector<1x128xf32>
    %333 = arith.addf %331, %332 : vector<1x128xf32>
    %334 = arith.mulf %317, %20 : vector<1x128xf32>
    %335 = arith.addf %333, %334 : vector<1x128xf32>
    %336 = arith.mulf %323, %26 : vector<1x128xf32>
    %337 = arith.mulf %335, %336 : vector<1x128xf32>
    %338 = arith.cmpf ogt, %337, %330 : vector<1x128xf32>
    %339 = arith.select %338, %337, %330 : vector<1x128xi1>, vector<1x128xf32>
    %340 = arith.select %338, %27, %13 : vector<1x128xi1>, vector<1x128xf32>
    %341 = arith.select %338, %28, %14 : vector<1x128xi1>, vector<1x128xf32>
    %342 = arith.select %338, %29, %15 : vector<1x128xi1>, vector<1x128xf32>
    %343 = arith.select %338, %30, %16 : vector<1x128xi1>, vector<1x128xf32>
    %344 = arith.select %338, %31, %17 : vector<1x128xi1>, vector<1x128xf32>
    %345 = arith.mulf %315, %32 : vector<1x128xf32>
    %346 = arith.mulf %316, %33 : vector<1x128xf32>
    %347 = arith.addf %345, %346 : vector<1x128xf32>
    %348 = arith.mulf %317, %34 : vector<1x128xf32>
    %349 = arith.addf %347, %348 : vector<1x128xf32>
    %350 = arith.mulf %323, %40 : vector<1x128xf32>
    %351 = arith.mulf %349, %350 : vector<1x128xf32>
    %352 = arith.cmpf ogt, %351, %339 : vector<1x128xf32>
    %353 = arith.select %352, %351, %339 : vector<1x128xi1>, vector<1x128xf32>
    %354 = arith.select %352, %41, %340 : vector<1x128xi1>, vector<1x128xf32>
    %355 = arith.select %352, %42, %341 : vector<1x128xi1>, vector<1x128xf32>
    %356 = arith.select %352, %43, %342 : vector<1x128xi1>, vector<1x128xf32>
    %357 = arith.select %352, %44, %343 : vector<1x128xi1>, vector<1x128xf32>
    %358 = arith.select %352, %45, %344 : vector<1x128xi1>, vector<1x128xf32>
    %359 = arith.mulf %315, %46 : vector<1x128xf32>
    %360 = arith.mulf %316, %47 : vector<1x128xf32>
    %361 = arith.addf %359, %360 : vector<1x128xf32>
    %362 = arith.mulf %317, %48 : vector<1x128xf32>
    %363 = arith.addf %361, %362 : vector<1x128xf32>
    %364 = arith.mulf %323, %54 : vector<1x128xf32>
    %365 = arith.mulf %363, %364 : vector<1x128xf32>
    %366 = arith.cmpf ogt, %365, %353 : vector<1x128xf32>
    %367 = arith.select %366, %365, %353 : vector<1x128xi1>, vector<1x128xf32>
    %368 = arith.select %366, %55, %354 : vector<1x128xi1>, vector<1x128xf32>
    %369 = arith.select %366, %56, %355 : vector<1x128xi1>, vector<1x128xf32>
    %370 = arith.select %366, %57, %356 : vector<1x128xi1>, vector<1x128xf32>
    %371 = arith.select %366, %58, %357 : vector<1x128xi1>, vector<1x128xf32>
    %372 = arith.select %366, %59, %358 : vector<1x128xi1>, vector<1x128xf32>
    %373 = arith.mulf %315, %60 : vector<1x128xf32>
    %374 = arith.mulf %316, %61 : vector<1x128xf32>
    %375 = arith.addf %373, %374 : vector<1x128xf32>
    %376 = arith.mulf %317, %62 : vector<1x128xf32>
    %377 = arith.addf %375, %376 : vector<1x128xf32>
    %378 = arith.mulf %323, %68 : vector<1x128xf32>
    %379 = arith.mulf %377, %378 : vector<1x128xf32>
    %380 = arith.cmpf ogt, %379, %367 : vector<1x128xf32>
    %381 = arith.select %380, %379, %367 : vector<1x128xi1>, vector<1x128xf32>
    %382 = arith.select %380, %69, %368 : vector<1x128xi1>, vector<1x128xf32>
    %383 = arith.select %380, %70, %369 : vector<1x128xi1>, vector<1x128xf32>
    %384 = arith.select %380, %71, %370 : vector<1x128xi1>, vector<1x128xf32>
    %385 = arith.select %380, %72, %371 : vector<1x128xi1>, vector<1x128xf32>
    %386 = arith.select %380, %73, %372 : vector<1x128xi1>, vector<1x128xf32>
    %387 = arith.mulf %315, %74 : vector<1x128xf32>
    %388 = arith.mulf %316, %75 : vector<1x128xf32>
    %389 = arith.addf %387, %388 : vector<1x128xf32>
    %390 = arith.mulf %317, %76 : vector<1x128xf32>
    %391 = arith.addf %389, %390 : vector<1x128xf32>
    %392 = arith.mulf %323, %82 : vector<1x128xf32>
    %393 = arith.mulf %391, %392 : vector<1x128xf32>
    %394 = arith.cmpf ogt, %393, %381 : vector<1x128xf32>
    %395 = arith.select %394, %393, %381 : vector<1x128xi1>, vector<1x128xf32>
    %396 = arith.select %394, %83, %382 : vector<1x128xi1>, vector<1x128xf32>
    %397 = arith.select %394, %84, %383 : vector<1x128xi1>, vector<1x128xf32>
    %398 = arith.select %394, %85, %384 : vector<1x128xi1>, vector<1x128xf32>
    %399 = arith.select %394, %86, %385 : vector<1x128xi1>, vector<1x128xf32>
    %400 = arith.select %394, %87, %386 : vector<1x128xi1>, vector<1x128xf32>
    %cst_9 = arith.constant 0.707106769 : f32
    %401 = vector.broadcast %cst_9 : f32 to vector<1x128xf32>
    %402 = arith.cmpf oge, %395, %401 : vector<1x128xf32>
    %403 = arith.extui %402 : vector<1x128xi1> to vector<1x128xi32>
    %404 = arith.sitofp %403 : vector<1x128xi32> to vector<1x128xf32>
    %405 = vector.extract_strided_slice %1 {offsets = [23, 0], sizes = [1, 128], strides = [1, 1]} : vector<32x128xf32> to vector<1x128xf32>
    %406 = arith.subf %405, %400 : vector<1x128xf32>
    %407 = arith.mulf %406, %406 : vector<1x128xf32>
    %408 = vector.extract_strided_slice %1 {offsets = [19, 0], sizes = [1, 128], strides = [1, 1]} : vector<32x128xf32> to vector<1x128xf32>
    %409 = arith.subf %408, %396 : vector<1x128xf32>
    %410 = arith.mulf %409, %409 : vector<1x128xf32>
    %411 = vector.extract_strided_slice %1 {offsets = [20, 0], sizes = [1, 128], strides = [1, 1]} : vector<32x128xf32> to vector<1x128xf32>
    %412 = arith.subf %411, %397 : vector<1x128xf32>
    %413 = arith.mulf %412, %412 : vector<1x128xf32>
    %414 = vector.extract_strided_slice %1 {offsets = [21, 0], sizes = [1, 128], strides = [1, 1]} : vector<32x128xf32> to vector<1x128xf32>
    %415 = arith.subf %414, %398 : vector<1x128xf32>
    %416 = arith.mulf %415, %415 : vector<1x128xf32>
    %417 = arith.addf %413, %416 : vector<1x128xf32>
    %418 = vector.extract_strided_slice %1 {offsets = [22, 0], sizes = [1, 128], strides = [1, 1]} : vector<32x128xf32> to vector<1x128xf32>
    %419 = arith.subf %418, %399 : vector<1x128xf32>
    %420 = arith.mulf %419, %419 : vector<1x128xf32>
    %421 = arith.addf %417, %420 : vector<1x128xf32>
    %cst_10 = arith.constant 0.333333343 : f32
    %422 = vector.broadcast %cst_10 : f32 to vector<1x128xf32>
    %423 = arith.mulf %421, %422 : vector<1x128xf32>
    %424 = arith.addf %407, %410 : vector<1x128xf32>
    %425 = arith.addf %424, %423 : vector<1x128xf32>
    %426 = arith.mulf %404, %425 : vector<1x128xf32>
    %427 = arith.addf %314, %426 : vector<1x128xf32>
    %428 = vector.extract_strided_slice %1 {offsets = [24, 0], sizes = [1, 128], strides = [1, 1]} : vector<32x128xf32> to vector<1x128xf32>
    %429 = vector.extract_strided_slice %1 {offsets = [25, 0], sizes = [1, 128], strides = [1, 1]} : vector<32x128xf32> to vector<1x128xf32>
    %430 = vector.extract_strided_slice %1 {offsets = [26, 0], sizes = [1, 128], strides = [1, 1]} : vector<32x128xf32> to vector<1x128xf32>
    %431 = arith.mulf %428, %428 : vector<1x128xf32>
    %432 = arith.mulf %429, %429 : vector<1x128xf32>
    %433 = arith.addf %431, %432 : vector<1x128xf32>
    %434 = arith.mulf %430, %430 : vector<1x128xf32>
    %435 = arith.addf %433, %434 : vector<1x128xf32>
    %436 = math.rsqrt %435 : vector<1x128xf32>
    %437 = arith.mulf %428, %4 : vector<1x128xf32>
    %438 = arith.mulf %429, %5 : vector<1x128xf32>
    %439 = arith.addf %437, %438 : vector<1x128xf32>
    %440 = arith.mulf %430, %6 : vector<1x128xf32>
    %441 = arith.addf %439, %440 : vector<1x128xf32>
    %442 = arith.mulf %436, %12 : vector<1x128xf32>
    %443 = arith.mulf %441, %442 : vector<1x128xf32>
    %444 = arith.mulf %428, %18 : vector<1x128xf32>
    %445 = arith.mulf %429, %19 : vector<1x128xf32>
    %446 = arith.addf %444, %445 : vector<1x128xf32>
    %447 = arith.mulf %430, %20 : vector<1x128xf32>
    %448 = arith.addf %446, %447 : vector<1x128xf32>
    %449 = arith.mulf %436, %26 : vector<1x128xf32>
    %450 = arith.mulf %448, %449 : vector<1x128xf32>
    %451 = arith.cmpf ogt, %450, %443 : vector<1x128xf32>
    %452 = arith.select %451, %450, %443 : vector<1x128xi1>, vector<1x128xf32>
    %453 = arith.select %451, %27, %13 : vector<1x128xi1>, vector<1x128xf32>
    %454 = arith.select %451, %28, %14 : vector<1x128xi1>, vector<1x128xf32>
    %455 = arith.select %451, %29, %15 : vector<1x128xi1>, vector<1x128xf32>
    %456 = arith.select %451, %30, %16 : vector<1x128xi1>, vector<1x128xf32>
    %457 = arith.select %451, %31, %17 : vector<1x128xi1>, vector<1x128xf32>
    %458 = arith.mulf %428, %32 : vector<1x128xf32>
    %459 = arith.mulf %429, %33 : vector<1x128xf32>
    %460 = arith.addf %458, %459 : vector<1x128xf32>
    %461 = arith.mulf %430, %34 : vector<1x128xf32>
    %462 = arith.addf %460, %461 : vector<1x128xf32>
    %463 = arith.mulf %436, %40 : vector<1x128xf32>
    %464 = arith.mulf %462, %463 : vector<1x128xf32>
    %465 = arith.cmpf ogt, %464, %452 : vector<1x128xf32>
    %466 = arith.select %465, %464, %452 : vector<1x128xi1>, vector<1x128xf32>
    %467 = arith.select %465, %41, %453 : vector<1x128xi1>, vector<1x128xf32>
    %468 = arith.select %465, %42, %454 : vector<1x128xi1>, vector<1x128xf32>
    %469 = arith.select %465, %43, %455 : vector<1x128xi1>, vector<1x128xf32>
    %470 = arith.select %465, %44, %456 : vector<1x128xi1>, vector<1x128xf32>
    %471 = arith.select %465, %45, %457 : vector<1x128xi1>, vector<1x128xf32>
    %472 = arith.mulf %428, %46 : vector<1x128xf32>
    %473 = arith.mulf %429, %47 : vector<1x128xf32>
    %474 = arith.addf %472, %473 : vector<1x128xf32>
    %475 = arith.mulf %430, %48 : vector<1x128xf32>
    %476 = arith.addf %474, %475 : vector<1x128xf32>
    %477 = arith.mulf %436, %54 : vector<1x128xf32>
    %478 = arith.mulf %476, %477 : vector<1x128xf32>
    %479 = arith.cmpf ogt, %478, %466 : vector<1x128xf32>
    %480 = arith.select %479, %478, %466 : vector<1x128xi1>, vector<1x128xf32>
    %481 = arith.select %479, %55, %467 : vector<1x128xi1>, vector<1x128xf32>
    %482 = arith.select %479, %56, %468 : vector<1x128xi1>, vector<1x128xf32>
    %483 = arith.select %479, %57, %469 : vector<1x128xi1>, vector<1x128xf32>
    %484 = arith.select %479, %58, %470 : vector<1x128xi1>, vector<1x128xf32>
    %485 = arith.select %479, %59, %471 : vector<1x128xi1>, vector<1x128xf32>
    %486 = arith.mulf %428, %60 : vector<1x128xf32>
    %487 = arith.mulf %429, %61 : vector<1x128xf32>
    %488 = arith.addf %486, %487 : vector<1x128xf32>
    %489 = arith.mulf %430, %62 : vector<1x128xf32>
    %490 = arith.addf %488, %489 : vector<1x128xf32>
    %491 = arith.mulf %436, %68 : vector<1x128xf32>
    %492 = arith.mulf %490, %491 : vector<1x128xf32>
    %493 = arith.cmpf ogt, %492, %480 : vector<1x128xf32>
    %494 = arith.select %493, %492, %480 : vector<1x128xi1>, vector<1x128xf32>
    %495 = arith.select %493, %69, %481 : vector<1x128xi1>, vector<1x128xf32>
    %496 = arith.select %493, %70, %482 : vector<1x128xi1>, vector<1x128xf32>
    %497 = arith.select %493, %71, %483 : vector<1x128xi1>, vector<1x128xf32>
    %498 = arith.select %493, %72, %484 : vector<1x128xi1>, vector<1x128xf32>
    %499 = arith.select %493, %73, %485 : vector<1x128xi1>, vector<1x128xf32>
    %500 = arith.mulf %428, %74 : vector<1x128xf32>
    %501 = arith.mulf %429, %75 : vector<1x128xf32>
    %502 = arith.addf %500, %501 : vector<1x128xf32>
    %503 = arith.mulf %430, %76 : vector<1x128xf32>
    %504 = arith.addf %502, %503 : vector<1x128xf32>
    %505 = arith.mulf %436, %82 : vector<1x128xf32>
    %506 = arith.mulf %504, %505 : vector<1x128xf32>
    %507 = arith.cmpf ogt, %506, %494 : vector<1x128xf32>
    %508 = arith.select %507, %506, %494 : vector<1x128xi1>, vector<1x128xf32>
    %509 = arith.select %507, %83, %495 : vector<1x128xi1>, vector<1x128xf32>
    %510 = arith.select %507, %84, %496 : vector<1x128xi1>, vector<1x128xf32>
    %511 = arith.select %507, %85, %497 : vector<1x128xi1>, vector<1x128xf32>
    %512 = arith.select %507, %86, %498 : vector<1x128xi1>, vector<1x128xf32>
    %513 = arith.select %507, %87, %499 : vector<1x128xi1>, vector<1x128xf32>
    %cst_11 = arith.constant 0.707106769 : f32
    %514 = vector.broadcast %cst_11 : f32 to vector<1x128xf32>
    %515 = arith.cmpf oge, %508, %514 : vector<1x128xf32>
    %516 = arith.extui %515 : vector<1x128xi1> to vector<1x128xi32>
    %517 = arith.sitofp %516 : vector<1x128xi32> to vector<1x128xf32>
    %518 = vector.extract_strided_slice %1 {offsets = [31, 0], sizes = [1, 128], strides = [1, 1]} : vector<32x128xf32> to vector<1x128xf32>
    %519 = arith.subf %518, %513 : vector<1x128xf32>
    %520 = arith.mulf %519, %519 : vector<1x128xf32>
    %521 = vector.extract_strided_slice %1 {offsets = [27, 0], sizes = [1, 128], strides = [1, 1]} : vector<32x128xf32> to vector<1x128xf32>
    %522 = arith.subf %521, %509 : vector<1x128xf32>
    %523 = arith.mulf %522, %522 : vector<1x128xf32>
    %524 = vector.extract_strided_slice %1 {offsets = [28, 0], sizes = [1, 128], strides = [1, 1]} : vector<32x128xf32> to vector<1x128xf32>
    %525 = arith.subf %524, %510 : vector<1x128xf32>
    %526 = arith.mulf %525, %525 : vector<1x128xf32>
    %527 = vector.extract_strided_slice %1 {offsets = [29, 0], sizes = [1, 128], strides = [1, 1]} : vector<32x128xf32> to vector<1x128xf32>
    %528 = arith.subf %527, %511 : vector<1x128xf32>
    %529 = arith.mulf %528, %528 : vector<1x128xf32>
    %530 = arith.addf %526, %529 : vector<1x128xf32>
    %531 = vector.extract_strided_slice %1 {offsets = [30, 0], sizes = [1, 128], strides = [1, 1]} : vector<32x128xf32> to vector<1x128xf32>
    %532 = arith.subf %531, %512 : vector<1x128xf32>
    %533 = arith.mulf %532, %532 : vector<1x128xf32>
    %534 = arith.addf %530, %533 : vector<1x128xf32>
    %cst_12 = arith.constant 0.333333343 : f32
    %535 = vector.broadcast %cst_12 : f32 to vector<1x128xf32>
    %536 = arith.mulf %534, %535 : vector<1x128xf32>
    %537 = arith.addf %520, %523 : vector<1x128xf32>
    %538 = arith.addf %537, %536 : vector<1x128xf32>
    %539 = arith.mulf %517, %538 : vector<1x128xf32>
    %540 = arith.addf %427, %539 : vector<1x128xf32>
    %c0_13 = arith.constant 0 : index
    %c0_14 = arith.constant 0 : index
    %c0_15 = arith.constant 0 : index
    %541 = vector.load %arg3[%c0_13, %c0_14, %c0_15] : memref<1x1x128xf32, #tpu.memory_space<vmem>>, vector<1x1x128xf32>
    %542 = vector.shape_cast %541 : vector<1x1x128xf32> to vector<1x128xf32>
    %543 = vector.shape_cast %540 : vector<1x128xf32> to vector<1x1x128xf32>
    tpu.vector_store %arg3[%c0_13, %c0_14, %c0_15], %543 {strides = array<i32>} : memref<1x1x128xf32, #tpu.memory_space<vmem>>, vector<1x1x128xf32>,
    return
  }
  func.func @transform_0(%arg0: i32) -> (i32, i32, i32) {
    %c0_i32 = arith.constant 0 : i32
    %c0_i32_0 = arith.constant 0 : i32
    %c0_i32_1 = arith.constant 0 : i32
    return %arg0, %c0_i32, %c0_i32_0 : i32, i32, i32
  }
  func.func @transform_1(%arg0: i32) -> (i32, i32, i32) {
    %c0_i32 = arith.constant 0 : i32
    %c0_i32_0 = arith.constant 0 : i32
    %c0_i32_1 = arith.constant 0 : i32
    return %arg0, %c0_i32, %c0_i32_0 : i32, i32, i32
  }
  func.func @transform_2(%arg0: i32) -> (i32, i32, i32) {
    %c0_i32 = arith.constant 0 : i32
    %c0_i32_0 = arith.constant 0 : i32
    %c0_i32_1 = arith.constant 0 : i32
    return %arg0, %c0_i32, %c0_i32_0 : i32, i32, i32
  }
}

</mosaic_0001>

<llo_original>
// kernel: tpu_custom_call.1
$region0: #{tpu_custom_call.1}
  #allocation0 [shape = 'u32[]', space=smem, size = 0x4, offset = 0x4, fixed_abs, tag = 'smem constant byte address 0x4 - core index']
  #allocation1 [shape = 'u32[144,128]{1,0:T(1,128)}', space=vmem, size = 0x12000, scoped, tag = 'internal scratch']
  %s0 = inlined_call_operand.hbm [shape: f32[1,32,128], index: 0, kind: input, shape index: {}]
  %s1 = inlined_call_operand.hbm [shape: f32[1,48,128], index: 1, kind: input, shape index: {}]
  %s2 = inlined_call_operand.hbm [shape: f32[1,1,128], index: 2, kind: output, shape index: {}]
  %s3 = sld [smem:[#allocation0]]
  $region26: #{tpu_custom_call.1} parent=0
    _
  %s5 = ssub.s32 1, %s3
  %s6 = scalar_select 0, %s5, %s3
  $region1: #{tpu_custom_call.1} parent=0
    #allocation2 [shape = 'u8[16384]{0}', space=vmem, size = 0x4000, scoped, tag = 'input window, operand 0, single buffered']
    #allocation3 [shape = 's32[1]{0}', space=sflag, size = 0x4, scoped, tag = 'scoped memory for tpu_custom_call.1']
    #allocation4 [shape = 's32[1]{0}', space=sflag, size = 0x4, scoped, tag = 'scoped memory for tpu_custom_call.1']
    #allocation5 [shape = 'u8[24576]{0}', space=vmem, size = 0x6000, scoped, tag = 'input window, operand 1, single buffered']
    #allocation6 [shape = 's32[1]{0}', space=sflag, size = 0x4, scoped, tag = 'scoped memory for tpu_custom_call.1']
    #allocation7 [shape = 'u8[512]{0}', space=vmem, size = 0x400, scoped, tag = 'output window, operand 0, single buffered']
    %7 = vsyncpa [#allocation3], 0
    %8 = vsyncpa [#allocation6], 0
    %9 = vsyncpa [#allocation4], 0
    // Predicated region
    $region2: #{tpu_custom_call.1} parent=1 // pred_check
      _
    $region3: #{tpu_custom_call.1} parent=1 // pred_check_branch
      %11 = sbr.rel (0) target = $region5
    $region4: #{tpu_custom_call.1} parent=1 // pred_region
      %s13 = ssub.s32 512, 512
      %14 = vsyncadd [#allocation3], %s13
      %s15 = sshll.u32 [#allocation2], 4
      %s16 = int_to_ptr.vmem [resolvable:$true] %s15
      %21 = dma.hbm_to_vmem [thread:$0]  %s0, 512, %s16, [#allocation3], 128, 128, 8
    $region5: #{tpu_custom_call.1} parent=1 // pred_fallthru
      _
    // Predicated region
    $region6: #{tpu_custom_call.1} parent=1 // pred_check
      _
    $region7: #{tpu_custom_call.1} parent=1 // pred_check_branch
      %23 = sbr.rel (0) target = $region9
    $region8: #{tpu_custom_call.1} parent=1 // pred_region
      %s25 = ssub.s32 768, 768
      %26 = vsyncadd [#allocation6], %s25
      %s27 = sshll.u32 [#allocation5], 4
      %s28 = int_to_ptr.vmem [resolvable:$true] %s27
      %33 = dma.hbm_to_vmem [thread:$0]  %s1, 768, %s28, [#allocation6], 128, 128, 8
    $region9: #{tpu_custom_call.1} parent=1 // pred_fallthru
      _
    // Predicated region
    $region10: #{tpu_custom_call.1} parent=1 // pred_check
      _
    $region11: #{tpu_custom_call.1} parent=1 // pred_check_branch
      %35 = sbr.rel (0) target = $region13
    $region12: #{tpu_custom_call.1} parent=1 // pred_region
      %36 = dma.done [#allocation3], 512
    $region13: #{tpu_custom_call.1} parent=1 // pred_fallthru
      _
    // Predicated region
    $region14: #{tpu_custom_call.1} parent=1 // pred_check
      _
    $region15: #{tpu_custom_call.1} parent=1 // pred_check_branch
      %38 = sbr.rel (0) target = $region17
    $region16: #{tpu_custom_call.1} parent=1 // pred_region
      %39 = dma.done [#allocation6], 768
    $region17: #{tpu_custom_call.1} parent=1 // pred_fallthru
      _
    %v40 = vld [vmem:[#allocation2] sm:$0xff]
    %v41 = vld [vmem:[#allocation2 + $0x8] sm:$0xff]
    %v42 = vld [vmem:[#allocation2 + $0x10] sm:$0xff]
    %v43 = vld [vmem:[#allocation2 + $0x18] sm:$0xff]
    %v44 = vld [vmem:[#allocation5] sm:$0xff]
    %v45 = vld [vmem:[#allocation5 + $0x8] sm:$0xff]
    %v46 = vld [vmem:[#allocation5 + $0x10] sm:$0xff]
    %v47 = vld [vmem:[#allocation5 + $0x18] sm:$0xff]
    %v48 = vld [vmem:[#allocation5 + $0x20] sm:$0xff]
    %v49 = vld [vmem:[#allocation5 + $0x28] sm:$0xff]
    %v50 = vmul.f32 %v44, %v44
    %v52 = vrot.slane %v50, 1
    %v54 = vadd.f32 %v50, %v52
    %v55 = vrot.slane %v50, 2
    %v57 = vadd.f32 %v54, %v55
    %v58 = vrsqrt.pop %v57
    %v59 = vmul.f32 %v45, %v45
    %v61 = vrot.slane %v59, 1
    %v63 = vadd.f32 %v59, %v61
    %v64 = vrot.slane %v59, 2
    %v66 = vadd.f32 %v63, %v64
    %v67 = vrsqrt.pop %v66
    %v68 = vmul.f32 %v46, %v46
    %v70 = vrot.slane %v68, 1
    %v72 = vadd.f32 %v68, %v70
    %v73 = vrot.slane %v68, 2
    %v75 = vadd.f32 %v72, %v73
    %v76 = vrsqrt.pop %v75
    %v77 = vmul.f32 %v47, %v47
    %v79 = vrot.slane %v77, 1
    %v81 = vadd.f32 %v77, %v79
    %v82 = vrot.slane %v77, 2
    %v84 = vadd.f32 %v81, %v82
    %v85 = vrsqrt.pop %v84
    %v86 = vmul.f32 %v48, %v48
    %v88 = vrot.slane %v86, 1
    %v90 = vadd.f32 %v86, %v88
    %v91 = vrot.slane %v86, 2
    %v93 = vadd.f32 %v90, %v91
    %v94 = vrsqrt.pop %v93
    %v95 = vmul.f32 %v49, %v49
    %v97 = vrot.slane %v95, 1
    %v99 = vadd.f32 %v95, %v97
    %v100 = vrot.slane %v95, 2
    %v102 = vadd.f32 %v99, %v100
    %v103 = vrsqrt.pop %v102
    %v104 = vmul.f32 %v40, %v40
    %v106 = vrot.slane %v104, 1
    %v108 = vadd.f32 %v104, %v106
    %v109 = vrot.slane %v104, 2
    %v111 = vadd.f32 %v108, %v109
    %v112 = vrsqrt.pop %v111
    %v113 = vmul.f32 %v40, %v44
    %v115 = vrot.slane %v113, 1
    %v117 = vadd.f32 %v113, %v115
    %v118 = vrot.slane %v113, 2
    %v120 = vadd.f32 %v117, %v118
    %v121 = vmul.f32 %v112, %v58
    %v122 = vmul.f32 %v120, %v121
    %v123 = vmul.f32 %v40, %v45
    %v125 = vrot.slane %v123, 1
    %v127 = vadd.f32 %v123, %v125
    %v128 = vrot.slane %v123, 2
    %v130 = vadd.f32 %v127, %v128
    %v131 = vmul.f32 %v112, %v67
    %v132 = vmul.f32 %v130, %v131
    %vm133 = vcmp.gt.f32.partialorder %v132, %v122
    %v134 = vsel %vm133, %v132, %v122
    %v136 = vrot.slane %v45, 3
    %v139 = vrot.slane %v44, 3
    %v141 = vsel %vm133, %v136, %v139
    %v142 = vrot.slane %v45, 4
    %v144 = vrot.slane %v44, 4
    %v146 = vsel %vm133, %v142, %v144
    %v147 = vrot.slane %v45, 5
    %v149 = vrot.slane %v44, 5
    %v151 = vsel %vm133, %v147, %v149
    %v152 = vrot.slane %v45, 6
    %v154 = vrot.slane %v44, 6
    %v156 = vsel %vm133, %v152, %v154
    %v157 = vrot.slane %v45, 7
    %v159 = vrot.slane %v44, 7
    %v161 = vsel %vm133, %v157, %v159
    %v162 = vmul.f32 %v40, %v46
    %v164 = vrot.slane %v162, 1
    %v166 = vadd.f32 %v162, %v164
    %v167 = vrot.slane %v162, 2
    %v169 = vadd.f32 %v166, %v167
    %v170 = vmul.f32 %v112, %v76
    %v171 = vmul.f32 %v169, %v170
    %vm172 = vcmp.gt.f32.partialorder %v171, %v134
    %v173 = vsel %vm172, %v171, %v134
    %v175 = vrot.slane %v46, 3
    %v177 = vsel %vm172, %v175, %v141
    %v178 = vrot.slane %v46, 4
    %v180 = vsel %vm172, %v178, %v146
    %v181 = vrot.slane %v46, 5
    %v183 = vsel %vm172, %v181, %v151
    %v184 = vrot.slane %v46, 6
    %v186 = vsel %vm172, %v184, %v156
    %v187 = vrot.slane %v46, 7
    %v189 = vsel %vm172, %v187, %v161
    %v190 = vmul.f32 %v40, %v47
    %v192 = vrot.slane %v190, 1
    %v194 = vadd.f32 %v190, %v192
    %v195 = vrot.slane %v190, 2
    %v197 = vadd.f32 %v194, %v195
    %v198 = vmul.f32 %v112, %v85
    %v199 = vmul.f32 %v197, %v198
    %vm200 = vcmp.gt.f32.partialorder %v199, %v173
    %v201 = vsel %vm200, %v199, %v173
    %v203 = vrot.slane %v47, 3
    %v205 = vsel %vm200, %v203, %v177
    %v206 = vrot.slane %v47, 4
    %v208 = vsel %vm200, %v206, %v180
    %v209 = vrot.slane %v47, 5
    %v211 = vsel %vm200, %v209, %v183
    %v212 = vrot.slane %v47, 6
    %v214 = vsel %vm200, %v212, %v186
    %v215 = vrot.slane %v47, 7
    %v217 = vsel %vm200, %v215, %v189
    %v218 = vmul.f32 %v40, %v48
    %v220 = vrot.slane %v218, 1
    %v222 = vadd.f32 %v218, %v220
    %v223 = vrot.slane %v218, 2
    %v225 = vadd.f32 %v222, %v223
    %v226 = vmul.f32 %v112, %v94
    %v227 = vmul.f32 %v225, %v226
    %vm228 = vcmp.gt.f32.partialorder %v227, %v201
    %v229 = vsel %vm228, %v227, %v201
    %v231 = vrot.slane %v48, 3
    %v233 = vsel %vm228, %v231, %v205
    %v234 = vrot.slane %v48, 4
    %v236 = vsel %vm228, %v234, %v208
    %v237 = vrot.slane %v48, 5
    %v239 = vsel %vm228, %v237, %v211
    %v240 = vrot.slane %v48, 6
    %v242 = vsel %vm228, %v240, %v214
    %v243 = vrot.slane %v48, 7
    %v245 = vsel %vm228, %v243, %v217
    %v246 = vmul.f32 %v40, %v49
    %v248 = vrot.slane %v246, 1
    %v250 = vadd.f32 %v246, %v248
    %v251 = vrot.slane %v246, 2
    %v253 = vadd.f32 %v250, %v251
    %v254 = vmul.f32 %v112, %v103
    %v255 = vmul.f32 %v253, %v254
    %vm256 = vcmp.gt.f32.partialorder %v255, %v229
    %v257 = vsel %vm256, %v255, %v229
    %v259 = vrot.slane %v49, 3
    %v261 = vsel %vm256, %v259, %v233
    %v262 = vrot.slane %v49, 4
    %v264 = vsel %vm256, %v262, %v236
    %v265 = vrot.slane %v49, 5
    %v267 = vsel %vm256, %v265, %v239
    %v268 = vrot.slane %v49, 6
    %v270 = vsel %vm256, %v268, %v242
    %v271 = vrot.slane %v49, 7
    %v273 = vsel %vm256, %v271, %v245
    %vm274 = vcmp.ge.f32.partialorder %v257, 0.70710677
    %v275 = vsel %vm274, 1, 0
    %v276 = vcvt.s32.f32 %v275
    %v278 = vrot.slane %v273, 1
    %v280 = vsub.f32 %v40, %v278
    %v281 = vmul.f32 %v280, %v280
    %v283 = vrot.slane %v261, 5
    %v285 = vsub.f32 %v40, %v283
    %v286 = vmul.f32 %v285, %v285
    %v288 = vrot.slane %v264, 4
    %v290 = vsub.f32 %v40, %v288
    %v291 = vmul.f32 %v290, %v290
    %v293 = vrot.slane %v267, 3
    %v295 = vsub.f32 %v40, %v293
    %v296 = vmul.f32 %v295, %v295
    %v298 = vrot.slane %v296, 1
    %v300 = vadd.f32 %v291, %v298
    %v302 = vrot.slane %v270, 2
    %v304 = vsub.f32 %v40, %v302
    %v305 = vmul.f32 %v304, %v304
    %v307 = vrot.slane %v305, 2
    %v309 = vadd.f32 %v300, %v307
    %v310 = vmul.f32 %v309, 0.33333334
    %v312 = vrot.slane %v286, 4
    %v314 = vadd.f32 %v281, %v312
    %v316 = vrot.slane %v310, 5
    %v318 = vadd.f32 %v314, %v316
    %v320 = vrot.slane %v318, 7
    %v322 = vmul.f32 %v276, %v320
    %v323 = vadd.f32 %v322, 0.0
    %v324 = vmul.f32 %v41, %v41
    %v326 = vrot.slane %v324, 1
    %v328 = vadd.f32 %v324, %v326
    %v329 = vrot.slane %v324, 2
    %v331 = vadd.f32 %v328, %v329
    %v332 = vrsqrt.pop %v331
    %v333 = vmul.f32 %v41, %v44
    %v335 = vrot.slane %v333, 1
    %v337 = vadd.f32 %v333, %v335
    %v338 = vrot.slane %v333, 2
    %v340 = vadd.f32 %v337, %v338
    %v341 = vmul.f32 %v332, %v58
    %v342 = vmul.f32 %v340, %v341
    %v343 = vmul.f32 %v41, %v45
    %v345 = vrot.slane %v343, 1
    %v347 = vadd.f32 %v343, %v345
    %v348 = vrot.slane %v343, 2
    %v350 = vadd.f32 %v347, %v348
    %v351 = vmul.f32 %v332, %v67
    %v352 = vmul.f32 %v350, %v351
    %vm353 = vcmp.gt.f32.partialorder %v352, %v342
    %v354 = vsel %vm353, %v352, %v342
    %v355 = vsel %vm353, %v136, %v139
    %v356 = vsel %vm353, %v142, %v144
    %v357 = vsel %vm353, %v147, %v149
    %v358 = vsel %vm353, %v152, %v154
    %v359 = vsel %vm353, %v157, %v159
    %v360 = vmul.f32 %v41, %v46
    %v362 = vrot.slane %v360, 1
    %v364 = vadd.f32 %v360, %v362
    %v365 = vrot.slane %v360, 2
    %v367 = vadd.f32 %v364, %v365
    %v368 = vmul.f32 %v332, %v76
    %v369 = vmul.f32 %v367, %v368
    %vm370 = vcmp.gt.f32.partialorder %v369, %v354
    %v371 = vsel %vm370, %v369, %v354
    %v372 = vsel %vm370, %v175, %v355
    %v373 = vsel %vm370, %v178, %v356
    %v374 = vsel %vm370, %v181, %v357
    %v375 = vsel %vm370, %v184, %v358
    %v376 = vsel %vm370, %v187, %v359
    %v377 = vmul.f32 %v41, %v47
    %v379 = vrot.slane %v377, 1
    %v381 = vadd.f32 %v377, %v379
    %v382 = vrot.slane %v377, 2
    %v384 = vadd.f32 %v381, %v382
    %v385 = vmul.f32 %v332, %v85
    %v386 = vmul.f32 %v384, %v385
    %vm387 = vcmp.gt.f32.partialorder %v386, %v371
    %v388 = vsel %vm387, %v386, %v371
    %v389 = vsel %vm387, %v203, %v372
    %v390 = vsel %vm387, %v206, %v373
    %v391 = vsel %vm387, %v209, %v374
    %v392 = vsel %vm387, %v212, %v375
    %v393 = vsel %vm387, %v215, %v376
    %v394 = vmul.f32 %v41, %v48
    %v396 = vrot.slane %v394, 1
    %v398 = vadd.f32 %v394, %v396
    %v399 = vrot.slane %v394, 2
    %v401 = vadd.f32 %v398, %v399
    %v402 = vmul.f32 %v332, %v94
    %v403 = vmul.f32 %v401, %v402
    %vm404 = vcmp.gt.f32.partialorder %v403, %v388
    %v405 = vsel %vm404, %v403, %v388
    %v406 = vsel %vm404, %v231, %v389
    %v407 = vsel %vm404, %v234, %v390
    %v408 = vsel %vm404, %v237, %v391
    %v409 = vsel %vm404, %v240, %v392
    %v410 = vsel %vm404, %v243, %v393
    %v411 = vmul.f32 %v41, %v49
    %v413 = vrot.slane %v411, 1
    %v415 = vadd.f32 %v411, %v413
    %v416 = vrot.slane %v411, 2
    %v418 = vadd.f32 %v415, %v416
    %v419 = vmul.f32 %v332, %v103
    %v420 = vmul.f32 %v418, %v419
    %vm421 = vcmp.gt.f32.partialorder %v420, %v405
    %v422 = vsel %vm421, %v420, %v405
    %v423 = vsel %vm421, %v259, %v406
    %v424 = vsel %vm421, %v262, %v407
    %v425 = vsel %vm421, %v265, %v408
    %v426 = vsel %vm421, %v268, %v409
    %v427 = vsel %vm421, %v271, %v410
    %vm428 = vcmp.ge.f32.partialorder %v422, 0.70710677
    %v429 = vsel %vm428, 1, 0
    %v430 = vcvt.s32.f32 %v429
    %v432 = vrot.slane %v427, 1
    %v434 = vsub.f32 %v41, %v432
    %v435 = vmul.f32 %v434, %v434
    %v437 = vrot.slane %v423, 5
    %v439 = vsub.f32 %v41, %v437
    %v440 = vmul.f32 %v439, %v439
    %v442 = vrot.slane %v424, 4
    %v444 = vsub.f32 %v41, %v442
    %v445 = vmul.f32 %v444, %v444
    %v447 = vrot.slane %v425, 3
    %v449 = vsub.f32 %v41, %v447
    %v450 = vmul.f32 %v449, %v449
    %v452 = vrot.slane %v450, 1
    %v454 = vadd.f32 %v445, %v452
    %v456 = vrot.slane %v426, 2
    %v458 = vsub.f32 %v41, %v456
    %v459 = vmul.f32 %v458, %v458
    %v461 = vrot.slane %v459, 2
    %v463 = vadd.f32 %v454, %v461
    %v464 = vmul.f32 %v463, 0.33333334
    %v466 = vrot.slane %v440, 4
    %v468 = vadd.f32 %v435, %v466
    %v470 = vrot.slane %v464, 5
    %v472 = vadd.f32 %v468, %v470
    %v474 = vrot.slane %v472, 7
    %v476 = vmul.f32 %v430, %v474
    %v477 = vadd.f32 %v323, %v476
    %v478 = vmul.f32 %v42, %v42
    %v480 = vrot.slane %v478, 1
    %v482 = vadd.f32 %v478, %v480
    %v483 = vrot.slane %v478, 2
    %v485 = vadd.f32 %v482, %v483
    %v486 = vrsqrt.pop %v485
    %v487 = vmul.f32 %v42, %v44
    %v489 = vrot.slane %v487, 1
    %v491 = vadd.f32 %v487, %v489
    %v492 = vrot.slane %v487, 2
    %v494 = vadd.f32 %v491, %v492
    %v495 = vmul.f32 %v486, %v58
    %v496 = vmul.f32 %v494, %v495
    %v497 = vmul.f32 %v42, %v45
    %v499 = vrot.slane %v497, 1
    %v501 = vadd.f32 %v497, %v499
    %v502 = vrot.slane %v497, 2
    %v504 = vadd.f32 %v501, %v502
    %v505 = vmul.f32 %v486, %v67
    %v506 = vmul.f32 %v504, %v505
    %vm507 = vcmp.gt.f32.partialorder %v506, %v496
    %v508 = vsel %vm507, %v506, %v496
    %v509 = vsel %vm507, %v136, %v139
    %v510 = vsel %vm507, %v142, %v144
    %v511 = vsel %vm507, %v147, %v149
    %v512 = vsel %vm507, %v152, %v154
    %v513 = vsel %vm507, %v157, %v159
    %v514 = vmul.f32 %v42, %v46
    %v516 = vrot.slane %v514, 1
    %v518 = vadd.f32 %v514, %v516
    %v519 = vrot.slane %v514, 2
    %v521 = vadd.f32 %v518, %v519
    %v522 = vmul.f32 %v486, %v76
    %v523 = vmul.f32 %v521, %v522
    %vm524 = vcmp.gt.f32.partialorder %v523, %v508
    %v525 = vsel %vm524, %v523, %v508
    %v526 = vsel %vm524, %v175, %v509
    %v527 = vsel %vm524, %v178, %v510
    %v528 = vsel %vm524, %v181, %v511
    %v529 = vsel %vm524, %v184, %v512
    %v530 = vsel %vm524, %v187, %v513
    %v531 = vmul.f32 %v42, %v47
    %v533 = vrot.slane %v531, 1
    %v535 = vadd.f32 %v531, %v533
    %v536 = vrot.slane %v531, 2
    %v538 = vadd.f32 %v535, %v536
    %v539 = vmul.f32 %v486, %v85
    %v540 = vmul.f32 %v538, %v539
    %vm541 = vcmp.gt.f32.partialorder %v540, %v525
    %v542 = vsel %vm541, %v540, %v525
    %v543 = vsel %vm541, %v203, %v526
    %v544 = vsel %vm541, %v206, %v527
    %v545 = vsel %vm541, %v209, %v528
    %v546 = vsel %vm541, %v212, %v529
    %v547 = vsel %vm541, %v215, %v530
    %v548 = vmul.f32 %v42, %v48
    %v550 = vrot.slane %v548, 1
    %v552 = vadd.f32 %v548, %v550
    %v553 = vrot.slane %v548, 2
    %v555 = vadd.f32 %v552, %v553
    %v556 = vmul.f32 %v486, %v94
    %v557 = vmul.f32 %v555, %v556
    %vm558 = vcmp.gt.f32.partialorder %v557, %v542
    %v559 = vsel %vm558, %v557, %v542
    %v560 = vsel %vm558, %v231, %v543
    %v561 = vsel %vm558, %v234, %v544
    %v562 = vsel %vm558, %v237, %v545
    %v563 = vsel %vm558, %v240, %v546
    %v564 = vsel %vm558, %v243, %v547
    %v565 = vmul.f32 %v42, %v49
    %v567 = vrot.slane %v565, 1
    %v569 = vadd.f32 %v565, %v567
    %v570 = vrot.slane %v565, 2
    %v572 = vadd.f32 %v569, %v570
    %v573 = vmul.f32 %v486, %v103
    %v574 = vmul.f32 %v572, %v573
    %vm575 = vcmp.gt.f32.partialorder %v574, %v559
    %v576 = vsel %vm575, %v574, %v559
    %v577 = vsel %vm575, %v259, %v560
    %v578 = vsel %vm575, %v262, %v561
    %v579 = vsel %vm575, %v265, %v562
    %v580 = vsel %vm575, %v268, %v563
    %v581 = vsel %vm575, %v271, %v564
    %vm582 = vcmp.ge.f32.partialorder %v576, 0.70710677
    %v583 = vsel %vm582, 1, 0
    %v584 = vcvt.s32.f32 %v583
    %v586 = vrot.slane %v581, 1
    %v588 = vsub.f32 %v42, %v586
    %v589 = vmul.f32 %v588, %v588
    %v591 = vrot.slane %v577, 5
    %v593 = vsub.f32 %v42, %v591
    %v594 = vmul.f32 %v593, %v593
    %v596 = vrot.slane %v578, 4
    %v598 = vsub.f32 %v42, %v596
    %v599 = vmul.f32 %v598, %v598
    %v601 = vrot.slane %v579, 3
    %v603 = vsub.f32 %v42, %v601
    %v604 = vmul.f32 %v603, %v603
    %v606 = vrot.slane %v604, 1
    %v608 = vadd.f32 %v599, %v606
    %v610 = vrot.slane %v580, 2
    %v612 = vsub.f32 %v42, %v610
    %v613 = vmul.f32 %v612, %v612
    %v615 = vrot.slane %v613, 2
    %v617 = vadd.f32 %v608, %v615
    %v618 = vmul.f32 %v617, 0.33333334
    %v620 = vrot.slane %v594, 4
    %v622 = vadd.f32 %v589, %v620
    %v624 = vrot.slane %v618, 5
    %v626 = vadd.f32 %v622, %v624
    %v628 = vrot.slane %v626, 7
    %v630 = vmul.f32 %v584, %v628
    %v631 = vadd.f32 %v477, %v630
    %v632 = vmul.f32 %v43, %v43
    %v634 = vrot.slane %v632, 1
    %v636 = vadd.f32 %v632, %v634
    %v637 = vrot.slane %v632, 2
    %v639 = vadd.f32 %v636, %v637
    %v640 = vrsqrt.pop %v639
    %v641 = vmul.f32 %v43, %v44
    %v643 = vrot.slane %v641, 1
    %v645 = vadd.f32 %v641, %v643
    %v646 = vrot.slane %v641, 2
    %v648 = vadd.f32 %v645, %v646
    %v649 = vmul.f32 %v640, %v58
    %v650 = vmul.f32 %v648, %v649
    %v651 = vmul.f32 %v43, %v45
    %v653 = vrot.slane %v651, 1
    %v655 = vadd.f32 %v651, %v653
    %v656 = vrot.slane %v651, 2
    %v658 = vadd.f32 %v655, %v656
    %v659 = vmul.f32 %v640, %v67
    %v660 = vmul.f32 %v658, %v659
    %vm661 = vcmp.gt.f32.partialorder %v660, %v650
    %v662 = vsel %vm661, %v660, %v650
    %v663 = vsel %vm661, %v136, %v139
    %v664 = vsel %vm661, %v142, %v144
    %v665 = vsel %vm661, %v147, %v149
    %v666 = vsel %vm661, %v152, %v154
    %v667 = vsel %vm661, %v157, %v159
    %v668 = vmul.f32 %v43, %v46
    %v670 = vrot.slane %v668, 1
    %v672 = vadd.f32 %v668, %v670
    %v673 = vrot.slane %v668, 2
    %v675 = vadd.f32 %v672, %v673
    %v676 = vmul.f32 %v640, %v76
    %v677 = vmul.f32 %v675, %v676
    %vm678 = vcmp.gt.f32.partialorder %v677, %v662
    %v679 = vsel %vm678, %v677, %v662
    %v680 = vsel %vm678, %v175, %v663
    %v681 = vsel %vm678, %v178, %v664
    %v682 = vsel %vm678, %v181, %v665
    %v683 = vsel %vm678, %v184, %v666
    %v684 = vsel %vm678, %v187, %v667
    %v685 = vmul.f32 %v43, %v47
    %v687 = vrot.slane %v685, 1
    %v689 = vadd.f32 %v685, %v687
    %v690 = vrot.slane %v685, 2
    %v692 = vadd.f32 %v689, %v690
    %v693 = vmul.f32 %v640, %v85
    %v694 = vmul.f32 %v692, %v693
    %vm695 = vcmp.gt.f32.partialorder %v694, %v679
    %v696 = vsel %vm695, %v694, %v679
    %v697 = vsel %vm695, %v203, %v680
    %v698 = vsel %vm695, %v206, %v681
    %v699 = vsel %vm695, %v209, %v682
    %v700 = vsel %vm695, %v212, %v683
    %v701 = vsel %vm695, %v215, %v684
    %v702 = vmul.f32 %v43, %v48
    %v704 = vrot.slane %v702, 1
    %v706 = vadd.f32 %v702, %v704
    %v707 = vrot.slane %v702, 2
    %v709 = vadd.f32 %v706, %v707
    %v710 = vmul.f32 %v640, %v94
    %v711 = vmul.f32 %v709, %v710
    %vm712 = vcmp.gt.f32.partialorder %v711, %v696
    %v713 = vsel %vm712, %v711, %v696
    %v714 = vsel %vm712, %v231, %v697
    %v715 = vsel %vm712, %v234, %v698
    %v716 = vsel %vm712, %v237, %v699
    %v717 = vsel %vm712, %v240, %v700
    %v718 = vsel %vm712, %v243, %v701
    %v719 = vmul.f32 %v43, %v49
    %v721 = vrot.slane %v719, 1
    %v723 = vadd.f32 %v719, %v721
    %v724 = vrot.slane %v719, 2
    %v726 = vadd.f32 %v723, %v724
    %v727 = vmul.f32 %v640, %v103
    %v728 = vmul.f32 %v726, %v727
    %vm729 = vcmp.gt.f32.partialorder %v728, %v713
    %v730 = vsel %vm729, %v728, %v713
    %v731 = vsel %vm729, %v259, %v714
    %v732 = vsel %vm729, %v262, %v715
    %v733 = vsel %vm729, %v265, %v716
    %v734 = vsel %vm729, %v268, %v717
    %v735 = vsel %vm729, %v271, %v718
    %vm736 = vcmp.ge.f32.partialorder %v730, 0.70710677
    %v737 = vsel %vm736, 1, 0
    %v738 = vcvt.s32.f32 %v737
    %v740 = vrot.slane %v735, 1
    %v742 = vsub.f32 %v43, %v740
    %v743 = vmul.f32 %v742, %v742
    %v745 = vrot.slane %v731, 5
    %v747 = vsub.f32 %v43, %v745
    %v748 = vmul.f32 %v747, %v747
    %v750 = vrot.slane %v732, 4
    %v752 = vsub.f32 %v43, %v750
    %v753 = vmul.f32 %v752, %v752
    %v755 = vrot.slane %v733, 3
    %v757 = vsub.f32 %v43, %v755
    %v758 = vmul.f32 %v757, %v757
    %v760 = vrot.slane %v758, 1
    %v762 = vadd.f32 %v753, %v760
    %v764 = vrot.slane %v734, 2
    %v766 = vsub.f32 %v43, %v764
    %v767 = vmul.f32 %v766, %v766
    %v769 = vrot.slane %v767, 2
    %v771 = vadd.f32 %v762, %v769
    %v772 = vmul.f32 %v771, 0.33333334
    %v774 = vrot.slane %v748, 4
    %v776 = vadd.f32 %v743, %v774
    %v778 = vrot.slane %v772, 5
    %v780 = vadd.f32 %v776, %v778
    %v782 = vrot.slane %v780, 7
    %v784 = vmul.f32 %v738, %v782
    %v785 = vadd.f32 %v631, %v784
    %786 = vst [vmem:[#allocation7] sm:$0x1] %v785
    // Predicated region
    $region18: #{tpu_custom_call.1} parent=1 // pred_check
      _
    $region19: #{tpu_custom_call.1} parent=1 // pred_check_branch
      %788 = sbr.rel (0) target = $region21
    $region20: #{tpu_custom_call.1} parent=1 // pred_region
      %s790 = ssub.s32 16, 16
      %791 = vsyncadd [#allocation4], %s790
      %s793 = sshll.u32 [#allocation7], 4
      %s794 = int_to_ptr.vmem [resolvable:$true] %s793
      %796 = dma.vmem_to_hbm [thread:$0]  %s794, 16, %s2, [#allocation4]
    $region21: #{tpu_custom_call.1} parent=1 // pred_fallthru
      _
    // Predicated region
    $region22: #{tpu_custom_call.1} parent=1 // pred_check
      _
    $region23: #{tpu_custom_call.1} parent=1 // pred_check_branch
      %798 = sbr.rel (0) target = $region25
    $region24: #{tpu_custom_call.1} parent=1 // pred_region
      %799 = dma.done [#allocation4], 16
    $region25: #{tpu_custom_call.1} parent=1 // pred_fallthru
      _
    %800 = vsyncpa [#allocation3], 1
    %801 = vsyncpa [#allocation6], 1
    %802 = vsyncpa [#allocation4], 1

</llo_original>
